<compile_context>
chip_gen: v7x
topology: tpu7x:2x2x1
jax: 0.10.0
libtpu: 0.0.40
codegen_flags: <defaults>
</compile_context>

<pallas_src>
import jax
import jax.numpy as jnp
from jax import lax
from jax.experimental import pallas as pl
from jax.experimental.pallas import tpu as pltpu

# ----------------------------- problem sizes --------------------------------
Z_DIM = 32          # latent dim (zDim)
Y_DIM = 16          # condition dim (yDim); trt_onehot is also Y_DIM wide
D = Z_DIM // 2      # coupling split
HIDDEN = 64         # coupling subnet hidden width
HIDDEN_C = 64       # classifier hidden width
N_CLASS = 8         # classifier output classes
LANES = 128         # lane-dense padded width
N_OUT_PAD = LANES   # padded logits width (zero-padded classes)
N_BLOCKS = 2        # number of coupling blocks in the flow
FEAT = Z_DIM + 2 * Y_DIM

# Weight slab layout (rows x 128 lanes, bf16).  All row offsets/sizes are
# multiples of 16 so static sublane slices never straddle a bf16 (16,128) tile.
# K-padding rows / N-padding lanes are zero, so padded contractions are exact.
W1_ROWS = D + Y_DIM          # 32  : fused [a | cond] first-layer weight
W2_ROWS = LANES              # 128 : HIDDEN real rows + 64 zero rows (K pad)
WC1_ROWS = Z_DIM             # 32
WC2_ROWS = LANES             # 128 : HIDDEN_C real rows + 64 zero rows
W1_OFF = (0, 32)
W2_OFF = (64, 192)
WC1_OFF = 320
WC2_OFF = 352
W_SLAB_ROWS = 480

# Bias slab layout (8 rows x 128 lanes, f32).
B1_ROW = (0, 1)
B2_ROW = (2, 3)
BC1_ROW = 4
BC2_ROW = 5
B_SLAB_ROWS = 8

TARGET_BATCH_TILE = 1024     # rows DMA'd per grid step for large batches
MAX_CHUNK = 128              # rows computed per inner-loop chunk


# ------------------------------- tiling --------------------------------------
def _round_up(x, m):
    return -(-x // m) * m


def _choose_tiling(batch):
    """Return (rows_per_grid_step, compute_chunk_rows, chunks_per_step)."""
    # >=2 grid steps once B >= 32 so v7x's two TensorCores both get work;
    # balance steps against B so padding never approaches a full extra tile.
    min_steps = 2 if batch >= 32 else 1
    n_steps = max(min_steps, -(-batch // TARGET_BATCH_TILE))
    bt = max(16, _round_up(-(-batch // n_steps), 16))
    if bt <= MAX_CHUNK:
        return bt, bt, 1
    # largest multiple of 16 (<= MAX_CHUNK) that divides bt
    for c in range(MAX_CHUNK, 15, -16):
        if bt % c == 0:
            return bt, c, bt // c
    return bt, 16, bt // 16   # unreachable: 16 always divides bt


# ------------------------------- kernel --------------------------------------
def _make_kernel(chunk_rows, n_chunks):
    def kernel(x_ref, w_ref, bias_ref, out_ref):
        def brow(r):
            return bias_ref[r:r + 1, :]                       # (1, 128) f32

        def subnet(a, c, k):
            # relu([a, c] @ W1 + b1) ; [s|t] = h @ W2 + b2  (single fused dots)
            lhs = jnp.concatenate([a, c], axis=-1).astype(jnp.bfloat16)   # (r, 32)
            w1 = w_ref[W1_OFF[k]:W1_OFF[k] + W1_ROWS, :]                  # (32, 128)
            h = (jnp.dot(lhs, w1, preferred_element_type=jnp.float32)
                 + brow(B1_ROW[k]))
            h = jnp.maximum(h, 0.0).astype(jnp.bfloat16)                  # (r, 128)
            w2 = w_ref[W2_OFF[k]:W2_OFF[k] + W2_ROWS, :]                  # (128, 128)
            st = (jnp.dot(h, w2, preferred_element_type=jnp.float32)
                  + brow(B2_ROW[k]))                                      # (r, 128)
            s = jnp.tanh(st[:, :D])
            t = st[:, D:2 * D]
            return s, t

        def compute(x):
            # x: (rows, FEAT) f32 -- latent stays f32 through coupling math.
            a = x[:, :D]
            b = x[:, D:Z_DIM]
            cond = x[:, Z_DIM:Z_DIM + Y_DIM]
            cond_new = x[:, Z_DIM + Y_DIM:FEAT]

            # ---- flow forward with original condition: z -> zz ----
            for k in range(N_BLOCKS):
                s, t = subnet(a, cond, k)
                b = b * jnp.exp(s) + t
                a, b = b, a                                   # fixed swap permutation

            # ---- flow reverse with new condition: zz -> zprime ----
            for k in reversed(range(N_BLOCKS)):
                a, b = b, a                                   # undo permutation
                s, t = subnet(a, cond_new, k)
                b = (b - t) * jnp.exp(-s)

            # ---- classifier head on trans_z = [a, b] ----
            trans_z = jnp.concatenate([a, b], axis=-1).astype(jnp.bfloat16)
            wc1 = w_ref[WC1_OFF:WC1_OFF + WC1_ROWS, :]                    # (32, 128)
            hc = (jnp.dot(trans_z, wc1, preferred_element_type=jnp.float32)
                  + brow(BC1_ROW))
            hc = jnp.maximum(hc, 0.0).astype(jnp.bfloat16)                # (r, 128)
            wc2 = w_ref[WC2_OFF:WC2_OFF + WC2_ROWS, :]                    # (128, 128)
            logits = (jnp.dot(hc, wc2, preferred_element_type=jnp.float32)
                      + brow(BC2_ROW))                                    # (r, 128)
            return logits.astype(jnp.bfloat16)                # lane-dense bf16 store

        if n_chunks == 1:
            out_ref[...] = compute(x_ref[...])
        else:
            # Big DMA block, small compute chunks (bounds live vregs).
            def body(c, carry):
                start = pl.multiple_of(c * chunk_rows, chunk_rows)
                out_ref[pl.ds(start, chunk_rows), :] = compute(
                    x_ref[pl.ds(start, chunk_rows), :])
                return carry
            lax.fori_loop(0, n_chunks, body, 0)

    return kernel


# ------------------------------- wrapper --------------------------------------
@jax.jit
def flow_resize_y_label_class(input_data, params):
    B, F = input_data.shape
    assert F == FEAT

    bt, chunk_rows, n_chunks = _choose_tiling(B)
    Bp = _round_up(B, bt)

    x = input_data.astype(jnp.float32)               # keep latent in f32 (accuracy)
    if Bp != B:
        x = jnp.pad(x, ((0, Bp - B), (0, 0)))

    w_slab = params["w_slab"]                        # (480, 128) bf16
    b_slab = params["b_slab"]                        # (8, 128)  f32

    grid = (Bp // bt,)
    in_specs = [
        pl.BlockSpec((bt, FEAT), lambda i: (i, 0)),
        pl.BlockSpec(w_slab.shape, lambda i: (0, 0)),
        pl.BlockSpec(b_slab.shape, lambda i: (0, 0)),
    ]
    out_spec = pl.BlockSpec((bt, N_OUT_PAD), lambda i: (i, 0))

    cost = pl.CostEstimate(
        flops=38912 * Bp,                            # 4 coupling subnets + classifier
        transcendentals=128 * Bp,                    # tanh + exp, 4x each, D lanes
        bytes_accessed=(Bp * FEAT * 4 + Bp * N_OUT_PAD * 2
                        + int(w_slab.size) * 2 + int(b_slab.size) * 4),
    )

    out = pl.pallas_call(
        _make_kernel(chunk_rows, n_chunks),
        out_shape=jax.ShapeDtypeStruct((Bp, N_OUT_PAD), jnp.bfloat16),
        grid_spec=pltpu.PrefetchScalarGridSpec(
            num_scalar_prefetch=0,
            grid=grid,
            in_specs=in_specs,
            out_specs=out_spec,
        ),
        compiler_params=pltpu.CompilerParams(
            dimension_semantics=("parallel",)),
        cost_estimate=cost,
    )(x, w_slab, b_slab)

    return out[:B, :N_CLASS].astype(jnp.float32)


# ----------------------- deterministic parameter init ------------------------
def init_params(key):
    ks = jax.random.split(key, 4)
    s = 0.1
    w1 = s * jax.random.normal(ks[0], (N_BLOCKS, D + Y_DIM, HIDDEN), jnp.float32)
    w2 = s * jax.random.normal(ks[1], (N_BLOCKS, HIDDEN, 2 * D), jnp.float32)
    wc1 = s * jax.random.normal(ks[2], (Z_DIM, HIDDEN_C), jnp.float32)
    wc2 = s * jax.random.normal(ks[3], (HIDDEN_C, N_CLASS), jnp.float32)

    # Pack everything into one bf16 weight slab and one f32 bias slab.
    # Zero padding rows/lanes make the K/N-padded in-kernel dots exact.
    w_slab = jnp.zeros((W_SLAB_ROWS, LANES), jnp.float32)
    for k in range(N_BLOCKS):
        w_slab = w_slab.at[W1_OFF[k]:W1_OFF[k] + W1_ROWS, :HIDDEN].set(w1[k])
        w_slab = w_slab.at[W2_OFF[k]:W2_OFF[k] + HIDDEN, :2 * D].set(w2[k])
    w_slab = w_slab.at[WC1_OFF:WC1_OFF + Z_DIM, :HIDDEN_C].set(wc1)
    w_slab = w_slab.at[WC2_OFF:WC2_OFF + HIDDEN_C, :N_CLASS].set(wc2)

    # All biases of the synthetic nets are zero; rows reserved as
    # [b1[0], b1[1], b2[0], b2[1], bc1, bc2, pad, pad].
    b_slab = jnp.zeros((B_SLAB_ROWS, LANES), jnp.float32)

    return dict(w_slab=w_slab.astype(jnp.bfloat16), b_slab=b_slab)


# ---------------------------------- main -------------------------------------
if __name__ == "__main__":
    key = jax.random.PRNGKey(0)
    k_data, k_params = jax.random.split(key)

    B = 50   # matches the module's default batch_size=50; exercises batch padding
    latent = jax.random.normal(jax.random.fold_in(k_data, 0), (B, Z_DIM), jnp.float32)
    condition = jax.random.normal(jax.random.fold_in(k_data, 1), (B, Y_DIM), jnp.float32)
    trt_idx = jax.random.randint(jax.random.fold_in(k_data, 2), (B,), 0, Y_DIM)
    trt_onehot = jax.nn.one_hot(trt_idx, Y_DIM, dtype=jnp.float32)

    # input_data = [latent | condition | trt_onehot], as the module expects.
    input_data = jnp.concatenate([latent, condition, trt_onehot], axis=-1)

    params = init_params(k_params)
    out = flow_resize_y_label_class(input_data, params)
    out = jax.block_until_ready(out)
    assert out.shape == (B, N_CLASS)
    assert jnp.all(jnp.isfinite(out))
    print("KERNEL_OK")
</pallas_src>

<mosaic_0001>
module attributes {stable_mosaic.version = 11 : i64} {
  func.func @kernel(%arg0: i32, %arg1: memref<32x64xf32, #tpu.memory_space<vmem>>, %arg2: memref<480x128xbf16, #tpu.memory_space<vmem>>, %arg3: memref<8x128xf32, #tpu.memory_space<vmem>>, %arg4: memref<32x128xbf16, #tpu.memory_space<vmem>>) attributes {dimension_semantics = [#tpu.dimension_semantics<parallel>], iteration_bounds = array<i64: 2>, scalar_prefetch = 0 : i64, scratch_operands = 0 : i64, tpu.core_type = #tpu.core_type<tc>, window_params = [{transform_indices = @transform_0, window_bounds = array<i64: 32, 64>}, {pipeline_mode = #tpu.pipeline_mode<synchronous>, transform_indices = @transform_1, window_bounds = array<i64: 480, 128>}, {pipeline_mode = #tpu.pipeline_mode<synchronous>, transform_indices = @transform_2, window_bounds = array<i64: 8, 128>}, {transform_indices = @transform_3, window_bounds = array<i64: 32, 128>}]} {
    %c0 = arith.constant 0 : index
    %c0_0 = arith.constant 0 : index
    %0 = vector.load %arg1[%c0, %c0_0] : memref<32x64xf32, #tpu.memory_space<vmem>>, vector<32x64xf32>
    %1 = vector.extract_strided_slice %0 {offsets = [0, 0], sizes = [32, 16], strides = [1, 1]} : vector<32x64xf32> to vector<32x16xf32>
    %2 = vector.extract_strided_slice %0 {offsets = [0, 16], sizes = [32, 16], strides = [1, 1]} : vector<32x64xf32> to vector<32x16xf32>
    %3 = vector.extract_strided_slice %0 {offsets = [0, 32], sizes = [32, 16], strides = [1, 1]} : vector<32x64xf32> to vector<32x16xf32>
    %4 = vector.extract_strided_slice %0 {offsets = [0, 48], sizes = [32, 16], strides = [1, 1]} : vector<32x64xf32> to vector<32x16xf32>
    %5 = tpu.concatenate %1, %3 in 1 : vector<32x16xf32>, vector<32x16xf32> -> vector<32x32xf32>
    %6 = arith.truncf %5 : vector<32x32xf32> to vector<32x32xbf16>
    %c0_1 = arith.constant 0 : index
    %c0_2 = arith.constant 0 : index
    %7 = vector.load %arg2[%c0_1, %c0_2] : memref<480x128xbf16, #tpu.memory_space<vmem>>, vector<32x128xbf16>
    %cst = arith.constant dense<0.000000e+00> : vector<32x128xf32>
    %8 = tpu.matmul %6, %7, %cst {dimension_numbers = #tpu.dot_dimension_numbers<[1], [0], [0], [1], [0, 0, 1, 1], [], []>} : vector<32x32xbf16>, vector<32x128xbf16>, vector<32x128xf32> -> vector<32x128xf32>
    %c0_3 = arith.constant 0 : index
    %c0_4 = arith.constant 0 : index
    %9 = vector.load %arg3[%c0_3, %c0_4] : memref<8x128xf32, #tpu.memory_space<vmem>>, vector<1x128xf32>
    %10 = vector.broadcast %9 : vector<1x128xf32> to vector<32x128xf32>
    %11 = arith.addf %8, %10 : vector<32x128xf32>
    %cst_5 = arith.constant 0.000000e+00 : f32
    %12 = vector.broadcast %cst_5 : f32 to vector<32x128xf32>
    %13 = arith.maximumf %11, %12 : vector<32x128xf32>
    %14 = arith.truncf %13 : vector<32x128xf32> to vector<32x128xbf16>
    %c64 = arith.constant 64 : index
    %c0_6 = arith.constant 0 : index
    %15 = vector.load %arg2[%c64, %c0_6] : memref<480x128xbf16, #tpu.memory_space<vmem>>, vector<128x128xbf16>
    %cst_7 = arith.constant dense<0.000000e+00> : vector<32x128xf32>
    %16 = tpu.matmul %14, %15, %cst_7 {dimension_numbers = #tpu.dot_dimension_numbers<[1], [0], [0], [1], [0, 0, 1, 1], [], []>} : vector<32x128xbf16>, vector<128x128xbf16>, vector<32x128xf32> -> vector<32x128xf32>
    %c2 = arith.constant 2 : index
    %c0_8 = arith.constant 0 : index
    %17 = vector.load %arg3[%c2, %c0_8] : memref<8x128xf32, #tpu.memory_space<vmem>>, vector<1x128xf32>
    %18 = vector.broadcast %17 : vector<1x128xf32> to vector<32x128xf32>
    %19 = arith.addf %16, %18 : vector<32x128xf32>
    %20 = vector.extract_strided_slice %19 {offsets = [0, 0], sizes = [32, 16], strides = [1, 1]} : vector<32x128xf32> to vector<32x16xf32>
    %21 = math.tanh %20 : vector<32x16xf32>
    %22 = vector.extract_strided_slice %19 {offsets = [0, 16], sizes = [32, 16], strides = [1, 1]} : vector<32x128xf32> to vector<32x16xf32>
    %23 = math.exp %21 : vector<32x16xf32>
    %24 = arith.mulf %2, %23 : vector<32x16xf32>
    %25 = arith.addf %24, %22 : vector<32x16xf32>
    %26 = tpu.concatenate %25, %3 in 1 : vector<32x16xf32>, vector<32x16xf32> -> vector<32x32xf32>
    %27 = arith.truncf %26 : vector<32x32xf32> to vector<32x32xbf16>
    %c32 = arith.constant 32 : index
    %c0_9 = arith.constant 0 : index
    %28 = vector.load %arg2[%c32, %c0_9] : memref<480x128xbf16, #tpu.memory_space<vmem>>, vector<32x128xbf16>
    %cst_10 = arith.constant dense<0.000000e+00> : vector<32x128xf32>
    %29 = tpu.matmul %27, %28, %cst_10 {dimension_numbers = #tpu.dot_dimension_numbers<[1], [0], [0], [1], [0, 0, 1, 1], [], []>} : vector<32x32xbf16>, vector<32x128xbf16>, vector<32x128xf32> -> vector<32x128xf32>
    %c1 = arith.constant 1 : index
    %c0_11 = arith.constant 0 : index
    %30 = vector.load %arg3[%c1, %c0_11] : memref<8x128xf32, #tpu.memory_space<vmem>>, vector<1x128xf32>
    %31 = vector.broadcast %30 : vector<1x128xf32> to vector<32x128xf32>
    %32 = arith.addf %29, %31 : vector<32x128xf32>
    %cst_12 = arith.constant 0.000000e+00 : f32
    %33 = vector.broadcast %cst_12 : f32 to vector<32x128xf32>
    %34 = arith.maximumf %32, %33 : vector<32x128xf32>
    %35 = arith.truncf %34 : vector<32x128xf32> to vector<32x128xbf16>
    %c192 = arith.constant 192 : index
    %c0_13 = arith.constant 0 : index
    %36 = vector.load %arg2[%c192, %c0_13] : memref<480x128xbf16, #tpu.memory_space<vmem>>, vector<128x128xbf16>
    %cst_14 = arith.constant dense<0.000000e+00> : vector<32x128xf32>
    %37 = tpu.matmul %35, %36, %cst_14 {dimension_numbers = #tpu.dot_dimension_numbers<[1], [0], [0], [1], [0, 0, 1, 1], [], []>} : vector<32x128xbf16>, vector<128x128xbf16>, vector<32x128xf32> -> vector<32x128xf32>
    %c3 = arith.constant 3 : index
    %c0_15 = arith.constant 0 : index
    %38 = vector.load %arg3[%c3, %c0_15] : memref<8x128xf32, #tpu.memory_space<vmem>>, vector<1x128xf32>
    %39 = vector.broadcast %38 : vector<1x128xf32> to vector<32x128xf32>
    %40 = arith.addf %37, %39 : vector<32x128xf32>
    %41 = vector.extract_strided_slice %40 {offsets = [0, 0], sizes = [32, 16], strides = [1, 1]} : vector<32x128xf32> to vector<32x16xf32>
    %42 = math.tanh %41 : vector<32x16xf32>
    %43 = vector.extract_strided_slice %40 {offsets = [0, 16], sizes = [32, 16], strides = [1, 1]} : vector<32x128xf32> to vector<32x16xf32>
    %44 = math.exp %42 : vector<32x16xf32>
    %45 = arith.mulf %1, %44 : vector<32x16xf32>
    %46 = arith.addf %45, %43 : vector<32x16xf32>
    %47 = tpu.concatenate %25, %4 in 1 : vector<32x16xf32>, vector<32x16xf32> -> vector<32x32xf32>
    %48 = arith.truncf %47 : vector<32x32xf32> to vector<32x32xbf16>
    %c32_16 = arith.constant 32 : index
    %c0_17 = arith.constant 0 : index
    %49 = vector.load %arg2[%c32_16, %c0_17] : memref<480x128xbf16, #tpu.memory_space<vmem>>, vector<32x128xbf16>
    %cst_18 = arith.constant dense<0.000000e+00> : vector<32x128xf32>
    %50 = tpu.matmul %48, %49, %cst_18 {dimension_numbers = #tpu.dot_dimension_numbers<[1], [0], [0], [1], [0, 0, 1, 1], [], []>} : vector<32x32xbf16>, vector<32x128xbf16>, vector<32x128xf32> -> vector<32x128xf32>
    %c1_19 = arith.constant 1 : index
    %c0_20 = arith.constant 0 : index
    %51 = vector.load %arg3[%c1_19, %c0_20] : memref<8x128xf32, #tpu.memory_space<vmem>>, vector<1x128xf32>
    %52 = vector.broadcast %51 : vector<1x128xf32> to vector<32x128xf32>
    %53 = arith.addf %50, %52 : vector<32x128xf32>
    %cst_21 = arith.constant 0.000000e+00 : f32
    %54 = vector.broadcast %cst_21 : f32 to vector<32x128xf32>
    %55 = arith.maximumf %53, %54 : vector<32x128xf32>
    %56 = arith.truncf %55 : vector<32x128xf32> to vector<32x128xbf16>
    %c192_22 = arith.constant 192 : index
    %c0_23 = arith.constant 0 : index
    %57 = vector.load %arg2[%c192_22, %c0_23] : memref<480x128xbf16, #tpu.memory_space<vmem>>, vector<128x128xbf16>
    %cst_24 = arith.constant dense<0.000000e+00> : vector<32x128xf32>
    %58 = tpu.matmul %56, %57, %cst_24 {dimension_numbers = #tpu.dot_dimension_numbers<[1], [0], [0], [1], [0, 0, 1, 1], [], []>} : vector<32x128xbf16>, vector<128x128xbf16>, vector<32x128xf32> -> vector<32x128xf32>
    %c3_25 = arith.constant 3 : index
    %c0_26 = arith.constant 0 : index
    %59 = vector.load %arg3[%c3_25, %c0_26] : memref<8x128xf32, #tpu.memory_space<vmem>>, vector<1x128xf32>
    %60 = vector.broadcast %59 : vector<1x128xf32> to vector<32x128xf32>
    %61 = arith.addf %58, %60 : vector<32x128xf32>
    %62 = vector.extract_strided_slice %61 {offsets = [0, 0], sizes = [32, 16], strides = [1, 1]} : vector<32x128xf32> to vector<32x16xf32>
    %63 = math.tanh %62 : vector<32x16xf32>
    %64 = vector.extract_strided_slice %61 {offsets = [0, 16], sizes = [32, 16], strides = [1, 1]} : vector<32x128xf32> to vector<32x16xf32>
    %65 = arith.subf %46, %64 : vector<32x16xf32>
    %cst_27 = arith.constant 0.000000e+00 : f32
    %66 = vector.broadcast %cst_27 : f32 to vector<32x16xf32>
    %67 = arith.subf %66, %63 : vector<32x16xf32>
    %68 = math.exp %67 : vector<32x16xf32>
    %69 = arith.mulf %65, %68 : vector<32x16xf32>
    %70 = tpu.concatenate %69, %4 in 1 : vector<32x16xf32>, vector<32x16xf32> -> vector<32x32xf32>
    %71 = arith.truncf %70 : vector<32x32xf32> to vector<32x32xbf16>
    %c0_28 = arith.constant 0 : index
    %c0_29 = arith.constant 0 : index
    %72 = vector.load %arg2[%c0_28, %c0_29] : memref<480x128xbf16, #tpu.memory_space<vmem>>, vector<32x128xbf16>
    %cst_30 = arith.constant dense<0.000000e+00> : vector<32x128xf32>
    %73 = tpu.matmul %71, %72, %cst_30 {dimension_numbers = #tpu.dot_dimension_numbers<[1], [0], [0], [1], [0, 0, 1, 1], [], []>} : vector<32x32xbf16>, vector<32x128xbf16>, vector<32x128xf32> -> vector<32x128xf32>
    %c0_31 = arith.constant 0 : index
    %c0_32 = arith.constant 0 : index
    %74 = vector.load %arg3[%c0_31, %c0_32] : memref<8x128xf32, #tpu.memory_space<vmem>>, vector<1x128xf32>
    %75 = vector.broadcast %74 : vector<1x128xf32> to vector<32x128xf32>
    %76 = arith.addf %73, %75 : vector<32x128xf32>
    %cst_33 = arith.constant 0.000000e+00 : f32
    %77 = vector.broadcast %cst_33 : f32 to vector<32x128xf32>
    %78 = arith.maximumf %76, %77 : vector<32x128xf32>
    %79 = arith.truncf %78 : vector<32x128xf32> to vector<32x128xbf16>
    %c64_34 = arith.constant 64 : index
    %c0_35 = arith.constant 0 : index
    %80 = vector.load %arg2[%c64_34, %c0_35] : memref<480x128xbf16, #tpu.memory_space<vmem>>, vector<128x128xbf16>
    %cst_36 = arith.constant dense<0.000000e+00> : vector<32x128xf32>
    %81 = tpu.matmul %79, %80, %cst_36 {dimension_numbers = #tpu.dot_dimension_numbers<[1], [0], [0], [1], [0, 0, 1, 1], [], []>} : vector<32x128xbf16>, vector<128x128xbf16>, vector<32x128xf32> -> vector<32x128xf32>
    %c2_37 = arith.constant 2 : index
    %c0_38 = arith.constant 0 : index
    %82 = vector.load %arg3[%c2_37, %c0_38] : memref<8x128xf32, #tpu.memory_space<vmem>>, vector<1x128xf32>
    %83 = vector.broadcast %82 : vector<1x128xf32> to vector<32x128xf32>
    %84 = arith.addf %81, %83 : vector<32x128xf32>
    %85 = vector.extract_strided_slice %84 {offsets = [0, 0], sizes = [32, 16], strides = [1, 1]} : vector<32x128xf32> to vector<32x16xf32>
    %86 = math.tanh %85 : vector<32x16xf32>
    %87 = vector.extract_strided_slice %84 {offsets = [0, 16], sizes = [32, 16], strides = [1, 1]} : vector<32x128xf32> to vector<32x16xf32>
    %88 = arith.subf %25, %87 : vector<32x16xf32>
    %cst_39 = arith.constant 0.000000e+00 : f32
    %89 = vector.broadcast %cst_39 : f32 to vector<32x16xf32>
    %90 = arith.subf %89, %86 : vector<32x16xf32>
    %91 = math.exp %90 : vector<32x16xf32>
    %92 = arith.mulf %88, %91 : vector<32x16xf32>
    %93 = tpu.concatenate %69, %92 in 1 : vector<32x16xf32>, vector<32x16xf32> -> vector<32x32xf32>
    %94 = arith.truncf %93 : vector<32x32xf32> to vector<32x32xbf16>
    %c320 = arith.constant 320 : index
    %c0_40 = arith.constant 0 : index
    %95 = vector.load %arg2[%c320, %c0_40] : memref<480x128xbf16, #tpu.memory_space<vmem>>, vector<32x128xbf16>
    %cst_41 = arith.constant dense<0.000000e+00> : vector<32x128xf32>
    %96 = tpu.matmul %94, %95, %cst_41 {dimension_numbers = #tpu.dot_dimension_numbers<[1], [0], [0], [1], [0, 0, 1, 1], [], []>} : vector<32x32xbf16>, vector<32x128xbf16>, vector<32x128xf32> -> vector<32x128xf32>
    %c4 = arith.constant 4 : index
    %c0_42 = arith.constant 0 : index
    %97 = vector.load %arg3[%c4, %c0_42] : memref<8x128xf32, #tpu.memory_space<vmem>>, vector<1x128xf32>
    %98 = vector.broadcast %97 : vector<1x128xf32> to vector<32x128xf32>
    %99 = arith.addf %96, %98 : vector<32x128xf32>
    %cst_43 = arith.constant 0.000000e+00 : f32
    %100 = vector.broadcast %cst_43 : f32 to vector<32x128xf32>
    %101 = arith.maximumf %99, %100 : vector<32x128xf32>
    %102 = arith.truncf %101 : vector<32x128xf32> to vector<32x128xbf16>
    %c352 = arith.constant 352 : index
    %c0_44 = arith.constant 0 : index
    %103 = vector.load %arg2[%c352, %c0_44] : memref<480x128xbf16, #tpu.memory_space<vmem>>, vector<128x128xbf16>
    %cst_45 = arith.constant dense<0.000000e+00> : vector<32x128xf32>
    %104 = tpu.matmul %102, %103, %cst_45 {dimension_numbers = #tpu.dot_dimension_numbers<[1], [0], [0], [1], [0, 0, 1, 1], [], []>} : vector<32x128xbf16>, vector<128x128xbf16>, vector<32x128xf32> -> vector<32x128xf32>
    %c5 = arith.constant 5 : index
    %c0_46 = arith.constant 0 : index
    %105 = vector.load %arg3[%c5, %c0_46] : memref<8x128xf32, #tpu.memory_space<vmem>>, vector<1x128xf32>
    %106 = vector.broadcast %105 : vector<1x128xf32> to vector<32x128xf32>
    %107 = arith.addf %104, %106 : vector<32x128xf32>
    %108 = arith.truncf %107 : vector<32x128xf32> to vector<32x128xbf16>
    %c0_47 = arith.constant 0 : index
    %c0_48 = arith.constant 0 : index
    %109 = vector.load %arg4[%c0_47, %c0_48] : memref<32x128xbf16, #tpu.memory_space<vmem>>, vector<32x128xbf16>
    tpu.vector_store %arg4[%c0_47, %c0_48], %108 {strides = array<i32>} : memref<32x128xbf16, #tpu.memory_space<vmem>>, vector<32x128xbf16>,
    return
  }
  func.func @transform_0(%arg0: i32) -> (i32, i32) {
    %c0_i32 = arith.constant 0 : i32
    %c0_i32_0 = arith.constant 0 : i32
    return %arg0, %c0_i32 : i32, i32
  }
  func.func @transform_1(%arg0: i32) -> (i32, i32) {
    %c0_i32 = arith.constant 0 : i32
    %c0_i32_0 = arith.constant 0 : i32
    %c0_i32_1 = arith.constant 0 : i32
    return %c0_i32, %c0_i32_0 : i32, i32
  }
  func.func @transform_2(%arg0: i32) -> (i32, i32) {
    %c0_i32 = arith.constant 0 : i32
    %c0_i32_0 = arith.constant 0 : i32
    %c0_i32_1 = arith.constant 0 : i32
    return %c0_i32, %c0_i32_0 : i32, i32
  }
  func.func @transform_3(%arg0: i32) -> (i32, i32) {
    %c0_i32 = arith.constant 0 : i32
    %c0_i32_0 = arith.constant 0 : i32
    return %arg0, %c0_i32 : i32, i32
  }
}

</mosaic_0001>

<llo_original>
// kernel: flow_resize_y_label_class.1
$region0: #{flow_resize_y_label_class.1}
  #allocation0 [shape = 'u32[]', space=smem, size = 0x4, offset = 0x4, fixed_abs, tag = 'smem constant byte address 0x4 - core index']
  #allocation1 [shape = 'u32[144,128]{1,0:T(1,128)}', space=vmem, size = 0x12000, scoped, tag = 'internal scratch']
  %s0 = inlined_call_operand.vmem [shape: f32[64,64], index: 0, kind: input, shape index: {}]
  %s1 = inlined_call_operand.hbm [shape: bf16[480,128], index: 1, kind: input, shape index: {}]
  %s2 = inlined_call_operand.vmem [shape: f32[8,128], index: 2, kind: input, shape index: {}]
  %s3 = inlined_call_operand.vmem [shape: bf16[64,128], index: 3, kind: output, shape index: {}]
  %s4 = sld [smem:[#allocation0]]
  $region49: #{flow_resize_y_label_class.1} parent=0
    _
  %s6 = ssub.s32 1, %s4
  %s7 = scalar_select 0, %s6, %s4
  $region1: #{flow_resize_y_label_class.1} parent=0
    #allocation2 [shape = 'u8[122880]{0}', space=vmem, size = 0x1e000, scoped, tag = 'input window, operand 1, single buffered']
    #allocation3 [shape = 's32[2]{0}', space=sflag, size = 0x8, scoped, tag = 'scoped memory for flow_resize_y_label_class.1']
    %8 = vsyncpa [#allocation3], 0
    loop: start=0, step=1, limit=4
    $region2: #{flow_resize_y_label_class.1} parent=1 // loop_pre_header
      _
    $region3: #{flow_resize_y_label_class.1} parent=1 // loop_header
      %s10 = sphi 0, %s14
      %p11 = scmp.ge.s32.totalorder %s10, 4
      %s20 = sphi 0, %s22
      %s23 = sphi 0, %s20
      %s24 = sphi 0, %s23
      %s40 = sphi 0, %s24
      %s44 = sphi 0, %s44
      %s46 = sphi 0, %s44
      %s47 = sphi 0, %s46
      %s61 = sphi 0, %s47
      %s65 = sphi 0, %s65
      %s67 = sphi 0, %s65
      %s68 = sphi 0, %s67
      %s82 = sphi 0, %s68
      %s88 = sphi 0, %s90
      %s91 = sphi 0, %s88
      %s92 = sphi 0, %s91
      %s108 = sphi 0, %s92
    $region4: #{flow_resize_y_label_class.1} parent=1 // loop_header_branch
      %13 = sbr.rel (%p11) target = $region8
    $region5: #{flow_resize_y_label_class.1} parent=1 // loop_body
      %s15 = ssub.s32 %s10, 1
      %s16 = ssub.s32 %s10, 2
      %s17 = sadd.s32 %s10, 1
      %s18 = ssub.s32 %s10, %s17
      %p19 = scmp.eq.s32.totalorder %s18, 0
      %s21 = sadd.s32 %s20, 1
      %s22 = scalar_select %p19, %s20, %s21
      %p25 = pneg %p19
      %p26 = scmp.eq.s32.totalorder %s10, 1
      %p27 = por %p25, %p26
      %p28 = scmp.ne.s32.totalorder %s20, %s23
      %p29 = scmp.eq.s32.totalorder %s10, 0
      %p30 = por %p28, %p29
      %p31 = scmp.ne.s32.totalorder %s20, %s23
      %p32 = scmp.eq.s32.totalorder %s15, 1
      %p33 = por %p31, %p32
      %p34 = scmp.ne.s32.totalorder %s23, %s24
      %p35 = scmp.eq.s32.totalorder %s15, 0
      %p36 = por %p34, %p35
      %p37 = scmp.ne.s32.totalorder %s23, %s24
      %p38 = scmp.eq.s32.totalorder %s16, 1
      %p39 = por %p37, %p38
      %p41 = scmp.ne.s32.totalorder %s24, %s40
      %p42 = scmp.eq.s32.totalorder %s16, 0
      %p43 = por %p41, %p42
      %s45 = sadd.s32 %s44, 1
      %p48 = scmp.eq.s32.totalorder %s10, 1
      %p49 = scmp.ne.s32.totalorder %s44, %s46
      %p50 = scmp.eq.s32.totalorder %s10, 0
      %p51 = por %p49, %p50
      %p52 = scmp.ne.s32.totalorder %s44, %s46
      %p53 = scmp.eq.s32.totalorder %s15, 1
      %p54 = por %p52, %p53
      %p55 = scmp.ne.s32.totalorder %s46, %s47
      %p56 = scmp.eq.s32.totalorder %s15, 0
      %p57 = por %p55, %p56
      %p58 = scmp.ne.s32.totalorder %s46, %s47
      %p59 = scmp.eq.s32.totalorder %s16, 1
      %p60 = por %p58, %p59
      %p62 = scmp.ne.s32.totalorder %s47, %s61
      %p63 = scmp.eq.s32.totalorder %s16, 0
      %p64 = por %p62, %p63
      %s66 = sadd.s32 %s65, 1
      %p69 = scmp.eq.s32.totalorder %s10, 1
      %p70 = scmp.ne.s32.totalorder %s65, %s67
      %p71 = scmp.eq.s32.totalorder %s10, 0
      %p72 = por %p70, %p71
      %p73 = scmp.ne.s32.totalorder %s65, %s67
      %p74 = scmp.eq.s32.totalorder %s15, 1
      %p75 = por %p73, %p74
      %p76 = scmp.ne.s32.totalorder %s67, %s68
      %p77 = scmp.eq.s32.totalorder %s15, 0
      %p78 = por %p76, %p77
      %p79 = scmp.ne.s32.totalorder %s67, %s68
      %p80 = scmp.eq.s32.totalorder %s16, 1
      %p81 = por %p79, %p80
      %p83 = scmp.ne.s32.totalorder %s68, %s82
      %p84 = scmp.eq.s32.totalorder %s16, 0
      %p85 = por %p83, %p84
      %s86 = ssub.s32 %s10, %s17
      %p87 = scmp.eq.s32.totalorder %s86, 0
      %s89 = sadd.s32 %s88, 1
      %s90 = scalar_select %p87, %s88, %s89
      %p93 = pneg %p87
      %p94 = scmp.eq.s32.totalorder %s10, 1
      %p95 = por %p93, %p94
      %p96 = scmp.ne.s32.totalorder %s88, %s91
      %p97 = scmp.eq.s32.totalorder %s10, 0
      %p98 = por %p96, %p97
      %p99 = scmp.ne.s32.totalorder %s88, %s91
      %p100 = scmp.eq.s32.totalorder %s15, 1
      %p101 = por %p99, %p100
      %p102 = scmp.ne.s32.totalorder %s91, %s92
      %p103 = scmp.eq.s32.totalorder %s15, 0
      %p104 = por %p102, %p103
      %p105 = scmp.ne.s32.totalorder %s91, %s92
      %p106 = scmp.eq.s32.totalorder %s16, 1
      %p107 = por %p105, %p106
      %p109 = scmp.ne.s32.totalorder %s92, %s108
      %p110 = scmp.eq.s32.totalorder %s16, 0
      %p111 = por %p109, %p110
      %p112 = scmp.le.s32.totalorder 1, %s10
      %p113 = scmp.lt.s32.totalorder %s10, 3
      %p114 = pnand %p112, %p113
      %p115 = pneg %p114
      // Predicated region
      $region9: #{flow_resize_y_label_class.1} parent=5 // pred_check
        _
      $region10: #{flow_resize_y_label_class.1} parent=5 // pred_check_branch
        %117 = sbr.rel (%p114) target = $region12
      $region11: #{flow_resize_y_label_class.1} parent=5 // pred_region
        %s118 = ssub.s32 %s10, 1
        // Predicated region
        $region13: #{flow_resize_y_label_class.1} parent=11 // pred_check
          %p119 = pneg %p57
        $region14: #{flow_resize_y_label_class.1} parent=11 // pred_check_branch
          %121 = sbr.rel (%p119) target = $region16
        $region15: #{flow_resize_y_label_class.1} parent=11 // pred_region
          %s123 = ssub.s32 3840, 3840
          %124 = vsyncadd [#allocation3], %s123
          %s125 = sshll.u32 [#allocation2], 4
          %s126 = int_to_ptr.vmem [resolvable:$true] %s125
          %131 = dma.hbm_to_vmem [thread:$0]  %s1, 3840, %s126, [#allocation3], 64, 64, 4
        $region16: #{flow_resize_y_label_class.1} parent=11 // pred_fallthru
          _
        // Predicated region
        $region17: #{flow_resize_y_label_class.1} parent=11 // pred_check
          %p132 = pneg %p78
        $region18: #{flow_resize_y_label_class.1} parent=11 // pred_check_branch
          %134 = sbr.rel (%p132) target = $region20
        $region19: #{flow_resize_y_label_class.1} parent=11 // pred_region
          _
        $region20: #{flow_resize_y_label_class.1} parent=11 // pred_fallthru
          _
      $region12: #{flow_resize_y_label_class.1} parent=5 // pred_fallthru
        _
      %p135 = scmp.lt.s32.totalorder %s10, 2
      // Predicated region
      $region21: #{flow_resize_y_label_class.1} parent=5 // pred_check
        %p136 = pneg %p135
      $region22: #{flow_resize_y_label_class.1} parent=5 // pred_check_branch
        %138 = sbr.rel (%p136) target = $region24
      $region23: #{flow_resize_y_label_class.1} parent=5 // pred_region
        // Predicated region
        $region25: #{flow_resize_y_label_class.1} parent=23 // pred_check
          %p139 = pneg %p30
        $region26: #{flow_resize_y_label_class.1} parent=23 // pred_check_branch
          %141 = sbr.rel (%p139) target = $region28
        $region27: #{flow_resize_y_label_class.1} parent=23 // pred_region
          %s142 = smul.u32 4, %s10
          %p143 = scmp.lt.s32.totalorder %s142, 7
          %s144 = scalar_select %p143, %s142, 7
          %s145 = smul.addr %s144, 8
          %s146 = scalar_lea.vmem %s0, %s145
          %s147 = smul.u32 4, %s10
        $region28: #{flow_resize_y_label_class.1} parent=23 // pred_fallthru
          _
      $region24: #{flow_resize_y_label_class.1} parent=5 // pred_fallthru
        _
      %p148 = scmp.le.s32.totalorder 1, %s10
      %p149 = scmp.lt.s32.totalorder %s10, 3
      %p150 = pnand %p148, %p149
      %p151 = pneg %p150
      // Predicated region
      $region29: #{flow_resize_y_label_class.1} parent=5 // pred_check
        _
      $region30: #{flow_resize_y_label_class.1} parent=5 // pred_check_branch
        %153 = sbr.rel (%p150) target = $region32
      $region31: #{flow_resize_y_label_class.1} parent=5 // pred_region
        %s154 = ssub.s32 %s10, 1
        // Predicated region
        $region33: #{flow_resize_y_label_class.1} parent=31 // pred_check
          %p155 = pneg %p57
        $region34: #{flow_resize_y_label_class.1} parent=31 // pred_check_branch
          %157 = sbr.rel (%p155) target = $region36
        $region35: #{flow_resize_y_label_class.1} parent=31 // pred_region
          %158 = dma.done [#allocation3], 3840
        $region36: #{flow_resize_y_label_class.1} parent=31 // pred_fallthru
          _
        %s159 = smul.u32 4, %s15
        %p160 = scmp.lt.s32.totalorder %s159, 7
        %s161 = scalar_select %p160, %s159, 7
        %s162 = smul.addr %s161, 8
        %s163 = scalar_lea.vmem %s0, %s162
        %p164 = pneg %p36
        %p165 = pneg %p33
        %p166 = pneg %p57
        %p167 = pneg %p54
        %p168 = pneg %p78
        %p169 = pneg %p75
        %p170 = pneg %p104
        %p171 = pneg %p101
        %s172 = smul.u32 4, %s15
        %p173 = scmp.lt.s32.totalorder %s172, 7
        %s174 = scalar_select %p173, %s172, 7
        %s175 = smul.addr %s174, 4
        %s176 = scalar_lea.vmem %s3, %s175
        %s177 = smul.u32 4, %s15
        %p178 = scmp.lt.s32.totalorder %s177, 7
        %s179 = scalar_select %p178, %s177, 7
        %s180 = smul.addr %s179, 8
        %s181 = scalar_lea.vmem %s0, %s180
        %s182 = smul.u32 4, %s15
        %s183 = smul.u32 4, %s15
        %p184 = scmp.lt.s32.totalorder %s183, 7
        %s185 = scalar_select %p184, %s183, 7
        %s186 = smul.addr %s185, 4
        %s187 = scalar_lea.vmem %s3, %s186
        %s188 = smul.u32 4, %s15
        %v190 = vld [vmem:[%s181] sm:$0xff]
        %v191 = vld [vmem:[%s181 + $0x8] sm:$0xff]
        %v192 = vld [vmem:[%s181 + $0x10] sm:$0xff]
        %v193 = vld [vmem:[%s181 + $0x18] sm:$0xff]
        %198 = vrot.lane.b32.xlu0 %v190, 112
        %v199 = vpop.permute.xlu0 %198
        %200 = vrot.lane.b32.xlu0 %v191, 112
        %v201 = vpop.permute.xlu0 %200
        %202 = vrot.lane.b32.xlu0 %v192, 112
        %v203 = vpop.permute.xlu0 %202
        %204 = vrot.lane.b32.xlu0 %v193, 112
        %v205 = vpop.permute.xlu0 %204
        %vm210 = vcmask 130048
        %v211 = vsel %vm210, %v190, %v199
        %v212 = vsel %vm210, %v191, %v201
        %v213 = vsel %vm210, %v192, %v203
        %v214 = vsel %vm210, %v193, %v205
        %v215 = vpack.c.bf16 %v212, %v211
        %v216 = vpack.c.bf16 %v214, %v213
        %v217 = vld [vmem:[#allocation2] sm:$0xf]
        %v218 = vld [vmem:[#allocation2 + $0x4] sm:$0xf]
        %v219 = vld [vmem:[#allocation2 + $0x8] sm:$0xf]
        %v220 = vld [vmem:[#allocation2 + $0xc] sm:$0xf]
        %v221 = vld [vmem:[%s2] sm:$0x1]
        %v222 = vlaneseq
        %v223 = vshrl.u32 %v222, 7
        %v224 = vsub.s32 0, %v223
        %v225 = vrot.slane %v221, %v224
        %v230 = vunpack.c.l.b16 %v217
        %v231 = vunpack.c.l.b16 %v218
        %v232 = vunpack.c.l.b16 %v219
        %v233 = vunpack.c.l.b16 %v220
        %v234 = vpack.c.b16 %v231, %v230
        %v235 = vpack.c.b16 %v233, %v232
        %vm238 = vcmask 261120
        %v240 = vsel %vm238, %v215, 0
        %v243 = vsel %vm238, %v216, 0
        %245 = vmatprep.subr.bf16.mxu0 0
        %246 = vmatpush1.bf16.msra.mxu0 %v234
        %247 = vmatprep.subr.bf16.mxu0 0
        %248 = vmatpush1.bf16.msra.mxu0 %v235
        %249 = vmatprep.subr.bf16.mxu0 0
        %250 = vmatpush1.bf16.msra.mxu0 0
        %251 = vmatprep.subr.bf16.mxu0 0
        %252 = vmatpush1.bf16.msra.mxu0 0
        %253 = vmatprep.subr.bf16.mxu0 0
        %254 = vmatpush1.bf16.msra.mxu0 0
        %255 = vmatprep.subr.bf16.mxu0 0
        %256 = vmatpush1.bf16.msra.mxu0 0
        %257 = vmatprep.subr.bf16.mxu0 0
        %258 = vmatpush1.bf16.msra.mxu0 0
        %259 = vmatprep.subr.bf16.mxu0 0
        %260 = vmatpush1.bf16.msra.mxu0 0
        %261 = vmatprep.subr.bf16.mxu0 0
        %262 = vmatpush1.bf16.msra.mxu0 0
        %263 = vmatprep.subr.bf16.mxu0 0
        %264 = vmatpush1.bf16.msra.mxu0 0
        %265 = vmatprep.subr.bf16.mxu0 0
        %266 = vmatpush1.bf16.msra.mxu0 0
        %267 = vmatprep.subr.bf16.mxu0 0
        %268 = vmatpush1.bf16.msra.mxu0 0
        %269 = vmatprep.subr.bf16.mxu0 0
        %270 = vmatpush1.bf16.msra.mxu0 0
        %271 = vmatprep.subr.bf16.mxu0 0
        %272 = vmatpush1.bf16.msra.mxu0 0
        %273 = vmatprep.subr.bf16.mxu0 0
        %274 = vmatpush1.bf16.msra.mxu0 0
        %275 = vmatprep.subr.bf16.mxu0 0
        %276 = vmatpush1.bf16.msra.mxu0 0
        %277 = vmatprep.mubr.bf16.mxu0 0
        %278 = vmatmul.mubr.bf16.gmra.mrb[0].mxu0 %v240
        %v279 = vpop.f32.mrb[0].mxu0
        %v280 = vadd.f32 %v225, %v279
        %v281 = vpop.f32.mrb[0].mxu0
        %v282 = vpop.f32.mrb[0].mxu0
        %v283 = vadd.f32 %v225, %v282
        %v284 = vpop.f32.mrb[0].mxu0
        %285 = vmatprep.mubr.bf16.mxu0 0
        %286 = vmatmul.mubr.bf16.gmra.mrb[0].mxu0 %v243
        %v287 = vpop.f32.mrb[0].mxu0
        %v288 = vadd.f32 %v225, %v287
        %v289 = vpop.f32.mrb[0].mxu0
        %v290 = vpop.f32.mrb[0].mxu0
        %v291 = vadd.f32 %v225, %v290
        %v292 = vpop.f32.mrb[0].mxu0
        %293 = vdwg.mxu0
        %v294 = vmax.f32 %v280, 0.0
        %v295 = vmax.f32 %v283, 0.0
        %v296 = vmax.f32 %v288, 0.0
        %v297 = vmax.f32 %v291, 0.0
        %v298 = vpack.c.bf16 %v295, %v294
        %v299 = vpack.c.bf16 %v297, %v296
        %v300 = vld [vmem:[#allocation2 + $0x20] sm:$0xf]
        %v301 = vld [vmem:[#allocation2 + $0x24] sm:$0xf]
        %v302 = vld [vmem:[#allocation2 + $0x28] sm:$0xf]
        %v303 = vld [vmem:[#allocation2 + $0x2c] sm:$0xf]
        %v304 = vld [vmem:[#allocation2 + $0x30] sm:$0xf]
        %v305 = vld [vmem:[#allocation2 + $0x34] sm:$0xf]
        %v306 = vld [vmem:[#allocation2 + $0x38] sm:$0xf]
        %v307 = vld [vmem:[#allocation2 + $0x3c] sm:$0xf]
        %v308 = vld [vmem:[#allocation2 + $0x40] sm:$0xf]
        %v309 = vld [vmem:[#allocation2 + $0x44] sm:$0xf]
        %v310 = vld [vmem:[#allocation2 + $0x48] sm:$0xf]
        %v311 = vld [vmem:[#allocation2 + $0x4c] sm:$0xf]
        %v312 = vld [vmem:[#allocation2 + $0x50] sm:$0xf]
        %v313 = vld [vmem:[#allocation2 + $0x54] sm:$0xf]
        %v314 = vld [vmem:[#allocation2 + $0x58] sm:$0xf]
        %v315 = vld [vmem:[#allocation2 + $0x5c] sm:$0xf]
        %v316 = vld [vmem:[%s2 + $0x2] sm:$0x1]
        %v317 = vlaneseq
        %v318 = vshrl.u32 %v317, 7
        %v319 = vsub.s32 0, %v318
        %v320 = vrot.slane %v316, %v319
        %v337 = vunpack.c.l.b16 %v300
        %v338 = vunpack.c.l.b16 %v301
        %v339 = vunpack.c.l.b16 %v302
        %v340 = vunpack.c.l.b16 %v303
        %v341 = vunpack.c.l.b16 %v304
        %v342 = vunpack.c.l.b16 %v305
        %v343 = vunpack.c.l.b16 %v306
        %v344 = vunpack.c.l.b16 %v307
        %v345 = vunpack.c.l.b16 %v308
        %v346 = vunpack.c.l.b16 %v309
        %v347 = vunpack.c.l.b16 %v310
        %v348 = vunpack.c.l.b16 %v311
        %v349 = vunpack.c.l.b16 %v312
        %v350 = vunpack.c.l.b16 %v313
        %v351 = vunpack.c.l.b16 %v314
        %v352 = vunpack.c.l.b16 %v315
        %v353 = vpack.c.b16 %v338, %v337
        %v354 = vpack.c.b16 %v340, %v339
        %v355 = vpack.c.b16 %v342, %v341
        %v356 = vpack.c.b16 %v344, %v343
        %v357 = vpack.c.b16 %v346, %v345
        %v358 = vpack.c.b16 %v348, %v347
        %v359 = vpack.c.b16 %v350, %v349
        %v360 = vpack.c.b16 %v352, %v351
        %369 = vmatprep.subr.bf16.mxu0 0
        %370 = vmatpush1.bf16.msra.mxu0 %v353
        %371 = vmatprep.subr.bf16.mxu0 0
        %372 = vmatpush1.bf16.msra.mxu0 %v354
        %373 = vmatprep.subr.bf16.mxu0 0
        %374 = vmatpush1.bf16.msra.mxu0 %v355
        %375 = vmatprep.subr.bf16.mxu0 0
        %376 = vmatpush1.bf16.msra.mxu0 %v356
        %377 = vmatprep.subr.bf16.mxu0 0
        %378 = vmatpush1.bf16.msra.mxu0 %v357
        %379 = vmatprep.subr.bf16.mxu0 0
        %380 = vmatpush1.bf16.msra.mxu0 %v358
        %381 = vmatprep.subr.bf16.mxu0 0
        %382 = vmatpush1.bf16.msra.mxu0 %v359
        %383 = vmatprep.subr.bf16.mxu0 0
        %384 = vmatpush1.bf16.msra.mxu0 %v360
        %385 = vmatprep.subr.bf16.mxu0 0
        %386 = vmatpush1.bf16.msra.mxu0 0
        %387 = vmatprep.subr.bf16.mxu0 0
        %388 = vmatpush1.bf16.msra.mxu0 0
        %389 = vmatprep.subr.bf16.mxu0 0
        %390 = vmatpush1.bf16.msra.mxu0 0
        %391 = vmatprep.subr.bf16.mxu0 0
        %392 = vmatpush1.bf16.msra.mxu0 0
        %393 = vmatprep.subr.bf16.mxu0 0
        %394 = vmatpush1.bf16.msra.mxu0 0
        %395 = vmatprep.subr.bf16.mxu0 0
        %396 = vmatpush1.bf16.msra.mxu0 0
        %397 = vmatprep.subr.bf16.mxu0 0
        %398 = vmatpush1.bf16.msra.mxu0 0
        %399 = vmatprep.subr.bf16.mxu0 0
        %400 = vmatpush1.bf16.msra.mxu0 0
        %401 = vmatprep.mubr.bf16.mxu0 0
        %402 = vmatmul.mubr.bf16.gmra.mrb[0].mxu0 %v298
        %v403 = vpop.f32.mrb[0].mxu0
        %v404 = vadd.f32 %v320, %v403
        %v405 = vpop.f32.mrb[0].mxu0
        %v406 = vpop.f32.mrb[0].mxu0
        %v407 = vadd.f32 %v320, %v406
        %v408 = vpop.f32.mrb[0].mxu0
        %409 = vmatprep.mubr.bf16.mxu0 0
        %410 = vmatmul.mubr.bf16.gmra.mrb[0].mxu0 %v299
        %v411 = vpop.f32.mrb[0].mxu0
        %v412 = vadd.f32 %v320, %v411
        %v413 = vpop.f32.mrb[0].mxu0
        %v414 = vpop.f32.mrb[0].mxu0
        %v415 = vadd.f32 %v320, %v414
        %v416 = vpop.f32.mrb[0].mxu0
        %417 = vdwg.mxu0
        %v418 = vtanh.pop %v404
        %v419 = vtanh.pop %v407
        %v420 = vtanh.pop %v412
        %v421 = vtanh.pop %v415
        %v422 = vmul.f32 %v418, 1.442695
        %v423 = vpow.pop %v422
        %v424 = vmul.f32 %v419, 1.442695
        %v425 = vpow.pop %v424
        %v426 = vmul.f32 %v420, 1.442695
        %v427 = vpow.pop %v426
        %v428 = vmul.f32 %v421, 1.442695
        %v429 = vpow.pop %v428
        %434 = vrot.lane.b32.xlu0 %v423, 16
        %v435 = vpop.permute.xlu0 %434
        %436 = vrot.lane.b32.xlu0 %v425, 16
        %v437 = vpop.permute.xlu0 %436
        %438 = vrot.lane.b32.xlu0 %v427, 16
        %v439 = vpop.permute.xlu0 %438
        %440 = vrot.lane.b32.xlu0 %v429, 16
        %v441 = vpop.permute.xlu0 %440
        %v446 = vmul.f32 %v190, %v435
        %v447 = vmul.f32 %v191, %v437
        %v448 = vmul.f32 %v192, %v439
        %v449 = vmul.f32 %v193, %v441
        %v450 = vadd.f32 %v446, %v404
        %v451 = vadd.f32 %v447, %v407
        %v452 = vadd.f32 %v448, %v412
        %v453 = vadd.f32 %v449, %v415
        %458 = vrot.lane.b32.xlu0 %v450, 112
        %v459 = vpop.permute.xlu0 %458
        %460 = vrot.lane.b32.xlu0 %v451, 112
        %v461 = vpop.permute.xlu0 %460
        %462 = vrot.lane.b32.xlu0 %v452, 112
        %v463 = vpop.permute.xlu0 %462
        %464 = vrot.lane.b32.xlu0 %v453, 112
        %v465 = vpop.permute.xlu0 %464
        %v470 = vsel %vm210, %v459, %v199
        %v471 = vsel %vm210, %v461, %v201
        %v472 = vsel %vm210, %v463, %v203
        %v473 = vsel %vm210, %v465, %v205
        %v474 = vpack.c.bf16 %v471, %v470
        %v475 = vpack.c.bf16 %v473, %v472
        %v476 = vld [vmem:[#allocation2 + $0x10] sm:$0xf]
        %v477 = vld [vmem:[#allocation2 + $0x14] sm:$0xf]
        %v478 = vld [vmem:[#allocation2 + $0x18] sm:$0xf]
        %v479 = vld [vmem:[#allocation2 + $0x1c] sm:$0xf]
        %v480 = vld [vmem:[%s2 + $0x1] sm:$0x1]
        %v481 = vlaneseq
        %v482 = vshrl.u32 %v481, 7
        %v483 = vsub.s32 0, %v482
        %v484 = vrot.slane %v480, %v483
        %v489 = vunpack.c.l.b16 %v476
        %v490 = vunpack.c.l.b16 %v477
        %v491 = vunpack.c.l.b16 %v478
        %v492 = vunpack.c.l.b16 %v479
        %v493 = vpack.c.b16 %v490, %v489
        %v494 = vpack.c.b16 %v492, %v491
        %v498 = vsel %vm238, %v474, 0
        %v501 = vsel %vm238, %v475, 0
        %503 = vmatprep.subr.bf16.mxu0 0
        %504 = vmatpush1.bf16.msra.mxu0 %v493
        %505 = vmatprep.subr.bf16.mxu0 0
        %506 = vmatpush1.bf16.msra.mxu0 %v494
        %507 = vmatprep.subr.bf16.mxu0 0
        %508 = vmatpush1.bf16.msra.mxu0 0
        %509 = vmatprep.subr.bf16.mxu0 0
        %510 = vmatpush1.bf16.msra.mxu0 0
        %511 = vmatprep.subr.bf16.mxu0 0
        %512 = vmatpush1.bf16.msra.mxu0 0
        %513 = vmatprep.subr.bf16.mxu0 0
        %514 = vmatpush1.bf16.msra.mxu0 0
        %515 = vmatprep.subr.bf16.mxu0 0
        %516 = vmatpush1.bf16.msra.mxu0 0
        %517 = vmatprep.subr.bf16.mxu0 0
        %518 = vmatpush1.bf16.msra.mxu0 0
        %519 = vmatprep.subr.bf16.mxu0 0
        %520 = vmatpush1.bf16.msra.mxu0 0
        %521 = vmatprep.subr.bf16.mxu0 0
        %522 = vmatpush1.bf16.msra.mxu0 0
        %523 = vmatprep.subr.bf16.mxu0 0
        %524 = vmatpush1.bf16.msra.mxu0 0
        %525 = vmatprep.subr.bf16.mxu0 0
        %526 = vmatpush1.bf16.msra.mxu0 0
        %527 = vmatprep.subr.bf16.mxu0 0
        %528 = vmatpush1.bf16.msra.mxu0 0
        %529 = vmatprep.subr.bf16.mxu0 0
        %530 = vmatpush1.bf16.msra.mxu0 0
        %531 = vmatprep.subr.bf16.mxu0 0
        %532 = vmatpush1.bf16.msra.mxu0 0
        %533 = vmatprep.subr.bf16.mxu0 0
        %534 = vmatpush1.bf16.msra.mxu0 0
        %535 = vmatprep.mubr.bf16.mxu0 0
        %536 = vmatmul.mubr.bf16.gmra.mrb[0].mxu0 %v498
        %v537 = vpop.f32.mrb[0].mxu0
        %v538 = vadd.f32 %v484, %v537
        %v539 = vpop.f32.mrb[0].mxu0
        %v540 = vpop.f32.mrb[0].mxu0
        %v541 = vadd.f32 %v484, %v540
        %v542 = vpop.f32.mrb[0].mxu0
        %543 = vmatprep.mubr.bf16.mxu0 0
        %544 = vmatmul.mubr.bf16.gmra.mrb[0].mxu0 %v501
        %v545 = vpop.f32.mrb[0].mxu0
        %v546 = vadd.f32 %v484, %v545
        %v547 = vpop.f32.mrb[0].mxu0
        %v548 = vpop.f32.mrb[0].mxu0
        %v549 = vadd.f32 %v484, %v548
        %v550 = vpop.f32.mrb[0].mxu0
        %551 = vdwg.mxu0
        %v552 = vmax.f32 %v538, 0.0
        %v553 = vmax.f32 %v541, 0.0
        %v554 = vmax.f32 %v546, 0.0
        %v555 = vmax.f32 %v549, 0.0
        %v556 = vpack.c.bf16 %v553, %v552
        %v557 = vpack.c.bf16 %v555, %v554
        %v558 = vld [vmem:[#allocation2 + $0x60] sm:$0xf]
        %v559 = vld [vmem:[#allocation2 + $0x64] sm:$0xf]
        %v560 = vld [vmem:[#allocation2 + $0x68] sm:$0xf]
        %v561 = vld [vmem:[#allocation2 + $0x6c] sm:$0xf]
        %v562 = vld [vmem:[#allocation2 + $0x70] sm:$0xf]
        %v563 = vld [vmem:[#allocation2 + $0x74] sm:$0xf]
        %v564 = vld [vmem:[#allocation2 + $0x78] sm:$0xf]
        %v565 = vld [vmem:[#allocation2 + $0x7c] sm:$0xf]
        %v566 = vld [vmem:[#allocation2 + $0x80] sm:$0xf]
        %v567 = vld [vmem:[#allocation2 + $0x84] sm:$0xf]
        %v568 = vld [vmem:[#allocation2 + $0x88] sm:$0xf]
        %v569 = vld [vmem:[#allocation2 + $0x8c] sm:$0xf]
        %v570 = vld [vmem:[#allocation2 + $0x90] sm:$0xf]
        %v571 = vld [vmem:[#allocation2 + $0x94] sm:$0xf]
        %v572 = vld [vmem:[#allocation2 + $0x98] sm:$0xf]
        %v573 = vld [vmem:[#allocation2 + $0x9c] sm:$0xf]
        %v574 = vld [vmem:[%s2 + $0x3] sm:$0x1]
        %v575 = vlaneseq
        %v576 = vshrl.u32 %v575, 7
        %v577 = vsub.s32 0, %v576
        %v578 = vrot.slane %v574, %v577
        %v595 = vunpack.c.l.b16 %v558
        %v596 = vunpack.c.l.b16 %v559
        %v597 = vunpack.c.l.b16 %v560
        %v598 = vunpack.c.l.b16 %v561
        %v599 = vunpack.c.l.b16 %v562
        %v600 = vunpack.c.l.b16 %v563
        %v601 = vunpack.c.l.b16 %v564
        %v602 = vunpack.c.l.b16 %v565
        %v603 = vunpack.c.l.b16 %v566
        %v604 = vunpack.c.l.b16 %v567
        %v605 = vunpack.c.l.b16 %v568
        %v606 = vunpack.c.l.b16 %v569
        %v607 = vunpack.c.l.b16 %v570
        %v608 = vunpack.c.l.b16 %v571
        %v609 = vunpack.c.l.b16 %v572
        %v610 = vunpack.c.l.b16 %v573
        %v611 = vpack.c.b16 %v596, %v595
        %v612 = vpack.c.b16 %v598, %v597
        %v613 = vpack.c.b16 %v600, %v599
        %v614 = vpack.c.b16 %v602, %v601
        %v615 = vpack.c.b16 %v604, %v603
        %v616 = vpack.c.b16 %v606, %v605
        %v617 = vpack.c.b16 %v608, %v607
        %v618 = vpack.c.b16 %v610, %v609
        %627 = vmatprep.subr.bf16.mxu0 0
        %628 = vmatpush1.bf16.msra.mxu0 %v611
        %629 = vmatprep.subr.bf16.mxu0 0
        %630 = vmatpush1.bf16.msra.mxu0 %v612
        %631 = vmatprep.subr.bf16.mxu0 0
        %632 = vmatpush1.bf16.msra.mxu0 %v613
        %633 = vmatprep.subr.bf16.mxu0 0
        %634 = vmatpush1.bf16.msra.mxu0 %v614
        %635 = vmatprep.subr.bf16.mxu0 0
        %636 = vmatpush1.bf16.msra.mxu0 %v615
        %637 = vmatprep.subr.bf16.mxu0 0
        %638 = vmatpush1.bf16.msra.mxu0 %v616
        %639 = vmatprep.subr.bf16.mxu0 0
        %640 = vmatpush1.bf16.msra.mxu0 %v617
        %641 = vmatprep.subr.bf16.mxu0 0
        %642 = vmatpush1.bf16.msra.mxu0 %v618
        %643 = vmatprep.subr.bf16.mxu0 0
        %644 = vmatpush1.bf16.msra.mxu0 0
        %645 = vmatprep.subr.bf16.mxu0 0
        %646 = vmatpush1.bf16.msra.mxu0 0
        %647 = vmatprep.subr.bf16.mxu0 0
        %648 = vmatpush1.bf16.msra.mxu0 0
        %649 = vmatprep.subr.bf16.mxu0 0
        %650 = vmatpush1.bf16.msra.mxu0 0
        %651 = vmatprep.subr.bf16.mxu0 0
        %652 = vmatpush1.bf16.msra.mxu0 0
        %653 = vmatprep.subr.bf16.mxu0 0
        %654 = vmatpush1.bf16.msra.mxu0 0
        %655 = vmatprep.subr.bf16.mxu0 0
        %656 = vmatpush1.bf16.msra.mxu0 0
        %657 = vmatprep.subr.bf16.mxu0 0
        %658 = vmatpush1.bf16.msra.mxu0 0
        %659 = vmatprep.mubr.bf16.mxu0 0
        %660 = vmatmul.mubr.bf16.gmra.mrb[0].mxu0 %v556
        %v661 = vpop.f32.mrb[0].mxu0
        %v662 = vadd.f32 %v578, %v661
        %v663 = vpop.f32.mrb[0].mxu0
        %v664 = vpop.f32.mrb[0].mxu0
        %v665 = vadd.f32 %v578, %v664
        %v666 = vpop.f32.mrb[0].mxu0
        %667 = vmatprep.mubr.bf16.mxu0 0
        %668 = vmatmul.mubr.bf16.gmra.mrb[0].mxu0 %v557
        %v669 = vpop.f32.mrb[0].mxu0
        %v670 = vadd.f32 %v578, %v669
        %v671 = vpop.f32.mrb[0].mxu0
        %v672 = vpop.f32.mrb[0].mxu0
        %v673 = vadd.f32 %v578, %v672
        %v674 = vpop.f32.mrb[0].mxu0
        %675 = vdwg.mxu0
        %v676 = vtanh.pop %v662
        %v677 = vtanh.pop %v665
        %v678 = vtanh.pop %v670
        %v679 = vtanh.pop %v673
        %v680 = vmul.f32 %v676, 1.442695
        %v681 = vpow.pop %v680
        %v682 = vmul.f32 %v677, 1.442695
        %v683 = vpow.pop %v682
        %v684 = vmul.f32 %v678, 1.442695
        %v685 = vpow.pop %v684
        %v686 = vmul.f32 %v679, 1.442695
        %v687 = vpow.pop %v686
        %v688 = vmul.f32 %v190, %v681
        %v689 = vmul.f32 %v191, %v683
        %v690 = vmul.f32 %v192, %v685
        %v691 = vmul.f32 %v193, %v687
        %696 = vrot.lane.b32.xlu0 %v662, 112
        %v697 = vpop.permute.xlu0 %696
        %698 = vrot.lane.b32.xlu0 %v665, 112
        %v699 = vpop.permute.xlu0 %698
        %700 = vrot.lane.b32.xlu0 %v670, 112
        %v701 = vpop.permute.xlu0 %700
        %702 = vrot.lane.b32.xlu0 %v673, 112
        %v703 = vpop.permute.xlu0 %702
        %v708 = vadd.f32 %v688, %v697
        %v709 = vadd.f32 %v689, %v699
        %v710 = vadd.f32 %v690, %v701
        %v711 = vadd.f32 %v691, %v703
        %712 = vrot.lane.b32.xlu0 %v190, 96
        %v713 = vpop.permute.xlu0 %712
        %714 = vrot.lane.b32.xlu0 %v191, 96
        %v715 = vpop.permute.xlu0 %714
        %716 = vrot.lane.b32.xlu0 %v192, 96
        %v717 = vpop.permute.xlu0 %716
        %718 = vrot.lane.b32.xlu0 %v193, 96
        %v719 = vpop.permute.xlu0 %718
        %v724 = vsel %vm210, %v459, %v713
        %v725 = vsel %vm210, %v461, %v715
        %v726 = vsel %vm210, %v463, %v717
        %v727 = vsel %vm210, %v465, %v719
        %v728 = vpack.c.bf16 %v725, %v724
        %v729 = vpack.c.bf16 %v727, %v726
        %v731 = vsel %vm238, %v728, 0
        %v734 = vsel %vm238, %v729, 0
        %736 = vmatprep.subr.bf16.mxu0 0
        %737 = vmatpush1.bf16.msra.mxu0 %v493
        %738 = vmatprep.subr.bf16.mxu0 0
        %739 = vmatpush1.bf16.msra.mxu0 %v494
        %740 = vmatprep.subr.bf16.mxu0 0
        %741 = vmatpush1.bf16.msra.mxu0 0
        %742 = vmatprep.subr.bf16.mxu0 0
        %743 = vmatpush1.bf16.msra.mxu0 0
        %744 = vmatprep.subr.bf16.mxu0 0
        %745 = vmatpush1.bf16.msra.mxu0 0
        %746 = vmatprep.subr.bf16.mxu0 0
        %747 = vmatpush1.bf16.msra.mxu0 0
        %748 = vmatprep.subr.bf16.mxu0 0
        %749 = vmatpush1.bf16.msra.mxu0 0
        %750 = vmatprep.subr.bf16.mxu0 0
        %751 = vmatpush1.bf16.msra.mxu0 0
        %752 = vmatprep.subr.bf16.mxu0 0
        %753 = vmatpush1.bf16.msra.mxu0 0
        %754 = vmatprep.subr.bf16.mxu0 0
        %755 = vmatpush1.bf16.msra.mxu0 0
        %756 = vmatprep.subr.bf16.mxu0 0
        %757 = vmatpush1.bf16.msra.mxu0 0
        %758 = vmatprep.subr.bf16.mxu0 0
        %759 = vmatpush1.bf16.msra.mxu0 0
        %760 = vmatprep.subr.bf16.mxu0 0
        %761 = vmatpush1.bf16.msra.mxu0 0
        %762 = vmatprep.subr.bf16.mxu0 0
        %763 = vmatpush1.bf16.msra.mxu0 0
        %764 = vmatprep.subr.bf16.mxu0 0
        %765 = vmatpush1.bf16.msra.mxu0 0
        %766 = vmatprep.subr.bf16.mxu0 0
        %767 = vmatpush1.bf16.msra.mxu0 0
        %768 = vmatprep.mubr.bf16.mxu0 0
        %769 = vmatmul.mubr.bf16.gmra.mrb[0].mxu0 %v731
        %v770 = vpop.f32.mrb[0].mxu0
        %v771 = vadd.f32 %v484, %v770
        %v772 = vpop.f32.mrb[0].mxu0
        %v773 = vpop.f32.mrb[0].mxu0
        %v774 = vadd.f32 %v484, %v773
        %v775 = vpop.f32.mrb[0].mxu0
        %776 = vmatprep.mubr.bf16.mxu0 0
        %777 = vmatmul.mubr.bf16.gmra.mrb[0].mxu0 %v734
        %v778 = vpop.f32.mrb[0].mxu0
        %v779 = vadd.f32 %v484, %v778
        %v780 = vpop.f32.mrb[0].mxu0
        %v781 = vpop.f32.mrb[0].mxu0
        %v782 = vadd.f32 %v484, %v781
        %v783 = vpop.f32.mrb[0].mxu0
        %784 = vdwg.mxu0
        %v785 = vmax.f32 %v771, 0.0
        %v786 = vmax.f32 %v774, 0.0
        %v787 = vmax.f32 %v779, 0.0
        %v788 = vmax.f32 %v782, 0.0
        %v789 = vpack.c.bf16 %v786, %v785
        %v790 = vpack.c.bf16 %v788, %v787
        %791 = vmatprep.subr.bf16.mxu0 0
        %792 = vmatpush1.bf16.msra.mxu0 %v611
        %793 = vmatprep.subr.bf16.mxu0 0
        %794 = vmatpush1.bf16.msra.mxu0 %v612
        %795 = vmatprep.subr.bf16.mxu0 0
        %796 = vmatpush1.bf16.msra.mxu0 %v613
        %797 = vmatprep.subr.bf16.mxu0 0
        %798 = vmatpush1.bf16.msra.mxu0 %v614
        %799 = vmatprep.subr.bf16.mxu0 0
        %800 = vmatpush1.bf16.msra.mxu0 %v615
        %801 = vmatprep.subr.bf16.mxu0 0
        %802 = vmatpush1.bf16.msra.mxu0 %v616
        %803 = vmatprep.subr.bf16.mxu0 0
        %804 = vmatpush1.bf16.msra.mxu0 %v617
        %805 = vmatprep.subr.bf16.mxu0 0
        %806 = vmatpush1.bf16.msra.mxu0 %v618
        %807 = vmatprep.subr.bf16.mxu0 0
        %808 = vmatpush1.bf16.msra.mxu0 0
        %809 = vmatprep.subr.bf16.mxu0 0
        %810 = vmatpush1.bf16.msra.mxu0 0
        %811 = vmatprep.subr.bf16.mxu0 0
        %812 = vmatpush1.bf16.msra.mxu0 0
        %813 = vmatprep.subr.bf16.mxu0 0
        %814 = vmatpush1.bf16.msra.mxu0 0
        %815 = vmatprep.subr.bf16.mxu0 0
        %816 = vmatpush1.bf16.msra.mxu0 0
        %817 = vmatprep.subr.bf16.mxu0 0
        %818 = vmatpush1.bf16.msra.mxu0 0
        %819 = vmatprep.subr.bf16.mxu0 0
        %820 = vmatpush1.bf16.msra.mxu0 0
        %821 = vmatprep.subr.bf16.mxu0 0
        %822 = vmatpush1.bf16.msra.mxu0 0
        %823 = vmatprep.mubr.bf16.mxu0 0
        %824 = vmatmul.mubr.bf16.gmra.mrb[0].mxu0 %v789
        %v825 = vpop.f32.mrb[0].mxu0
        %v826 = vadd.f32 %v578, %v825
        %v827 = vpop.f32.mrb[0].mxu0
        %v828 = vpop.f32.mrb[0].mxu0
        %v829 = vadd.f32 %v578, %v828
        %v830 = vpop.f32.mrb[0].mxu0
        %831 = vmatprep.mubr.bf16.mxu0 0
        %832 = vmatmul.mubr.bf16.gmra.mrb[0].mxu0 %v790
        %v833 = vpop.f32.mrb[0].mxu0
        %v834 = vadd.f32 %v578, %v833
        %v835 = vpop.f32.mrb[0].mxu0
        %v836 = vpop.f32.mrb[0].mxu0
        %v837 = vadd.f32 %v578, %v836
        %v838 = vpop.f32.mrb[0].mxu0
        %839 = vdwg.mxu0
        %v840 = vtanh.pop %v826
        %v841 = vtanh.pop %v829
        %v842 = vtanh.pop %v834
        %v843 = vtanh.pop %v837
        %848 = vrot.lane.b32.xlu0 %v826, 112
        %v849 = vpop.permute.xlu0 %848
        %850 = vrot.lane.b32.xlu0 %v829, 112
        %v851 = vpop.permute.xlu0 %850
        %852 = vrot.lane.b32.xlu0 %v834, 112
        %v853 = vpop.permute.xlu0 %852
        %854 = vrot.lane.b32.xlu0 %v837, 112
        %v855 = vpop.permute.xlu0 %854
        %v860 = vsub.f32 %v708, %v849
        %v861 = vsub.f32 %v709, %v851
        %v862 = vsub.f32 %v710, %v853
        %v863 = vsub.f32 %v711, %v855
        %v864 = vsub.f32 0.0, %v840
        %v865 = vsub.f32 0.0, %v841
        %v866 = vsub.f32 0.0, %v842
        %v867 = vsub.f32 0.0, %v843
        %v868 = vmul.f32 %v864, 1.442695
        %v869 = vpow.pop %v868
        %v870 = vmul.f32 %v865, 1.442695
        %v871 = vpow.pop %v870
        %v872 = vmul.f32 %v866, 1.442695
        %v873 = vpow.pop %v872
        %v874 = vmul.f32 %v867, 1.442695
        %v875 = vpow.pop %v874
        %v876 = vmul.f32 %v860, %v869
        %v877 = vmul.f32 %v861, %v871
        %v878 = vmul.f32 %v862, %v873
        %v879 = vmul.f32 %v863, %v875
        %v880 = vsel %vm210, %v876, %v713
        %v881 = vsel %vm210, %v877, %v715
        %v882 = vsel %vm210, %v878, %v717
        %v883 = vsel %vm210, %v879, %v719
        %v884 = vpack.c.bf16 %v881, %v880
        %v885 = vpack.c.bf16 %v883, %v882
        %v887 = vsel %vm238, %v884, 0
        %v890 = vsel %vm238, %v885, 0
        %892 = vmatprep.subr.bf16.mxu0 0
        %893 = vmatpush1.bf16.msra.mxu0 %v234
        %894 = vmatprep.subr.bf16.mxu0 0
        %895 = vmatpush1.bf16.msra.mxu0 %v235
        %896 = vmatprep.subr.bf16.mxu0 0
        %897 = vmatpush1.bf16.msra.mxu0 0
        %898 = vmatprep.subr.bf16.mxu0 0
        %899 = vmatpush1.bf16.msra.mxu0 0
        %900 = vmatprep.subr.bf16.mxu0 0
        %901 = vmatpush1.bf16.msra.mxu0 0
        %902 = vmatprep.subr.bf16.mxu0 0
        %903 = vmatpush1.bf16.msra.mxu0 0
        %904 = vmatprep.subr.bf16.mxu0 0
        %905 = vmatpush1.bf16.msra.mxu0 0
        %906 = vmatprep.subr.bf16.mxu0 0
        %907 = vmatpush1.bf16.msra.mxu0 0
        %908 = vmatprep.subr.bf16.mxu0 0
        %909 = vmatpush1.bf16.msra.mxu0 0
        %910 = vmatprep.subr.bf16.mxu0 0
        %911 = vmatpush1.bf16.msra.mxu0 0
        %912 = vmatprep.subr.bf16.mxu0 0
        %913 = vmatpush1.bf16.msra.mxu0 0
        %914 = vmatprep.subr.bf16.mxu0 0
        %915 = vmatpush1.bf16.msra.mxu0 0
        %916 = vmatprep.subr.bf16.mxu0 0
        %917 = vmatpush1.bf16.msra.mxu0 0
        %918 = vmatprep.subr.bf16.mxu0 0
        %919 = vmatpush1.bf16.msra.mxu0 0
        %920 = vmatprep.subr.bf16.mxu0 0
        %921 = vmatpush1.bf16.msra.mxu0 0
        %922 = vmatprep.subr.bf16.mxu0 0
        %923 = vmatpush1.bf16.msra.mxu0 0
        %924 = vmatprep.mubr.bf16.mxu0 0
        %925 = vmatmul.mubr.bf16.gmra.mrb[0].mxu0 %v887
        %v926 = vpop.f32.mrb[0].mxu0
        %v927 = vadd.f32 %v225, %v926
        %v928 = vpop.f32.mrb[0].mxu0
        %v929 = vpop.f32.mrb[0].mxu0
        %v930 = vadd.f32 %v225, %v929
        %v931 = vpop.f32.mrb[0].mxu0
        %932 = vmatprep.mubr.bf16.mxu0 0
        %933 = vmatmul.mubr.bf16.gmra.mrb[0].mxu0 %v890
        %v934 = vpop.f32.mrb[0].mxu0
        %v935 = vadd.f32 %v225, %v934
        %v936 = vpop.f32.mrb[0].mxu0
        %v937 = vpop.f32.mrb[0].mxu0
        %v938 = vadd.f32 %v225, %v937
        %v939 = vpop.f32.mrb[0].mxu0
        %940 = vdwg.mxu0
        %v941 = vmax.f32 %v927, 0.0
        %v942 = vmax.f32 %v930, 0.0
        %v943 = vmax.f32 %v935, 0.0
        %v944 = vmax.f32 %v938, 0.0
        %v945 = vpack.c.bf16 %v942, %v941
        %v946 = vpack.c.bf16 %v944, %v943
        %947 = vmatprep.subr.bf16.mxu0 0
        %948 = vmatpush1.bf16.msra.mxu0 %v353
        %949 = vmatprep.subr.bf16.mxu0 0
        %950 = vmatpush1.bf16.msra.mxu0 %v354
        %951 = vmatprep.subr.bf16.mxu0 0
        %952 = vmatpush1.bf16.msra.mxu0 %v355
        %953 = vmatprep.subr.bf16.mxu0 0
        %954 = vmatpush1.bf16.msra.mxu0 %v356
        %955 = vmatprep.subr.bf16.mxu0 0
        %956 = vmatpush1.bf16.msra.mxu0 %v357
        %957 = vmatprep.subr.bf16.mxu0 0
        %958 = vmatpush1.bf16.msra.mxu0 %v358
        %959 = vmatprep.subr.bf16.mxu0 0
        %960 = vmatpush1.bf16.msra.mxu0 %v359
        %961 = vmatprep.subr.bf16.mxu0 0
        %962 = vmatpush1.bf16.msra.mxu0 %v360
        %963 = vmatprep.subr.bf16.mxu0 0
        %964 = vmatpush1.bf16.msra.mxu0 0
        %965 = vmatprep.subr.bf16.mxu0 0
        %966 = vmatpush1.bf16.msra.mxu0 0
        %967 = vmatprep.subr.bf16.mxu0 0
        %968 = vmatpush1.bf16.msra.mxu0 0
        %969 = vmatprep.subr.bf16.mxu0 0
        %970 = vmatpush1.bf16.msra.mxu0 0
        %971 = vmatprep.subr.bf16.mxu0 0
        %972 = vmatpush1.bf16.msra.mxu0 0
        %973 = vmatprep.subr.bf16.mxu0 0
        %974 = vmatpush1.bf16.msra.mxu0 0
        %975 = vmatprep.subr.bf16.mxu0 0
        %976 = vmatpush1.bf16.msra.mxu0 0
        %977 = vmatprep.subr.bf16.mxu0 0
        %978 = vmatpush1.bf16.msra.mxu0 0
        %979 = vmatprep.mubr.bf16.mxu0 0
        %980 = vmatmul.mubr.bf16.gmra.mrb[0].mxu0 %v945
        %v981 = vpop.f32.mrb[0].mxu0
        %v982 = vadd.f32 %v320, %v981
        %v983 = vpop.f32.mrb[0].mxu0
        %v984 = vpop.f32.mrb[0].mxu0
        %v985 = vadd.f32 %v320, %v984
        %v986 = vpop.f32.mrb[0].mxu0
        %987 = vmatprep.mubr.bf16.mxu0 0
        %988 = vmatmul.mubr.bf16.gmra.mrb[0].mxu0 %v946
        %v989 = vpop.f32.mrb[0].mxu0
        %v990 = vadd.f32 %v320, %v989
        %v991 = vpop.f32.mrb[0].mxu0
        %v992 = vpop.f32.mrb[0].mxu0
        %v993 = vadd.f32 %v320, %v992
        %v994 = vpop.f32.mrb[0].mxu0
        %995 = vdwg.mxu0
        %v996 = vtanh.pop %v982
        %v997 = vtanh.pop %v985
        %v998 = vtanh.pop %v990
        %v999 = vtanh.pop %v993
        %v1000 = vsub.f32 %v450, %v982
        %v1001 = vsub.f32 %v451, %v985
        %v1002 = vsub.f32 %v452, %v990
        %v1003 = vsub.f32 %v453, %v993
        %v1004 = vsub.f32 0.0, %v996
        %v1005 = vsub.f32 0.0, %v997
        %v1006 = vsub.f32 0.0, %v998
        %v1007 = vsub.f32 0.0, %v999
        %v1008 = vmul.f32 %v1004, 1.442695
        %v1009 = vpow.pop %v1008
        %v1010 = vmul.f32 %v1005, 1.442695
        %v1011 = vpow.pop %v1010
        %v1012 = vmul.f32 %v1006, 1.442695
        %v1013 = vpow.pop %v1012
        %v1014 = vmul.f32 %v1007, 1.442695
        %v1015 = vpow.pop %v1014
        %1020 = vrot.lane.b32.xlu0 %v1009, 16
        %v1021 = vpop.permute.xlu0 %1020
        %1022 = vrot.lane.b32.xlu0 %v1011, 16
        %v1023 = vpop.permute.xlu0 %1022
        %1024 = vrot.lane.b32.xlu0 %v1013, 16
        %v1025 = vpop.permute.xlu0 %1024
        %1026 = vrot.lane.b32.xlu0 %v1015, 16
        %v1027 = vpop.permute.xlu0 %1026
        %v1032 = vmul.f32 %v1000, %v1021
        %v1033 = vmul.f32 %v1001, %v1023
        %v1034 = vmul.f32 %v1002, %v1025
        %v1035 = vmul.f32 %v1003, %v1027
        %v1036 = vsel %vm210, %v876, %v1032
        %v1037 = vsel %vm210, %v877, %v1033
        %v1038 = vsel %vm210, %v878, %v1034
        %v1039 = vsel %vm210, %v879, %v1035
        %v1040 = vpack.c.bf16 %v1037, %v1036
        %v1041 = vpack.c.bf16 %v1039, %v1038
        %v1042 = vld [vmem:[#allocation2 + $0xa0] sm:$0xf]
        %v1043 = vld [vmem:[#allocation2 + $0xa4] sm:$0xf]
        %v1044 = vld [vmem:[#allocation2 + $0xa8] sm:$0xf]
        %v1045 = vld [vmem:[#allocation2 + $0xac] sm:$0xf]
        %v1046 = vld [vmem:[%s2 + $0x4] sm:$0x1]
        %v1047 = vlaneseq
        %v1048 = vshrl.u32 %v1047, 7
        %v1049 = vsub.s32 0, %v1048
        %v1050 = vrot.slane %v1046, %v1049
        %v1055 = vunpack.c.l.b16 %v1042
        %v1056 = vunpack.c.l.b16 %v1043
        %v1057 = vunpack.c.l.b16 %v1044
        %v1058 = vunpack.c.l.b16 %v1045
        %v1059 = vpack.c.b16 %v1056, %v1055
        %v1060 = vpack.c.b16 %v1058, %v1057
        %v1064 = vsel %vm238, %v1040, 0
        %v1067 = vsel %vm238, %v1041, 0
        %1069 = vmatprep.subr.bf16.mxu0 0
        %1070 = vmatpush1.bf16.msra.mxu0 %v1059
        %1071 = vmatprep.subr.bf16.mxu0 0
        %1072 = vmatpush1.bf16.msra.mxu0 %v1060
        %1073 = vmatprep.subr.bf16.mxu0 0
        %1074 = vmatpush1.bf16.msra.mxu0 0
        %1075 = vmatprep.subr.bf16.mxu0 0
        %1076 = vmatpush1.bf16.msra.mxu0 0
        %1077 = vmatprep.subr.bf16.mxu0 0
        %1078 = vmatpush1.bf16.msra.mxu0 0
        %1079 = vmatprep.subr.bf16.mxu0 0
        %1080 = vmatpush1.bf16.msra.mxu0 0
        %1081 = vmatprep.subr.bf16.mxu0 0
        %1082 = vmatpush1.bf16.msra.mxu0 0
        %1083 = vmatprep.subr.bf16.mxu0 0
        %1084 = vmatpush1.bf16.msra.mxu0 0
        %1085 = vmatprep.subr.bf16.mxu0 0
        %1086 = vmatpush1.bf16.msra.mxu0 0
        %1087 = vmatprep.subr.bf16.mxu0 0
        %1088 = vmatpush1.bf16.msra.mxu0 0
        %1089 = vmatprep.subr.bf16.mxu0 0
        %1090 = vmatpush1.bf16.msra.mxu0 0
        %1091 = vmatprep.subr.bf16.mxu0 0
        %1092 = vmatpush1.bf16.msra.mxu0 0
        %1093 = vmatprep.subr.bf16.mxu0 0
        %1094 = vmatpush1.bf16.msra.mxu0 0
        %1095 = vmatprep.subr.bf16.mxu0 0
        %1096 = vmatpush1.bf16.msra.mxu0 0
        %1097 = vmatprep.subr.bf16.mxu0 0
        %1098 = vmatpush1.bf16.msra.mxu0 0
        %1099 = vmatprep.subr.bf16.mxu0 0
        %1100 = vmatpush1.bf16.msra.mxu0 0
        %1101 = vmatprep.mubr.bf16.mxu0 0
        %1102 = vmatmul.mubr.bf16.gmra.mrb[0].mxu0 %v1064
        %v1103 = vpop.f32.mrb[0].mxu0
        %v1104 = vadd.f32 %v1050, %v1103
        %v1105 = vpop.f32.mrb[0].mxu0
        %v1106 = vpop.f32.mrb[0].mxu0
        %v1107 = vadd.f32 %v1050, %v1106
        %v1108 = vpop.f32.mrb[0].mxu0
        %1109 = vmatprep.mubr.bf16.mxu0 0
        %1110 = vmatmul.mubr.bf16.gmra.mrb[0].mxu0 %v1067
        %v1111 = vpop.f32.mrb[0].mxu0
        %v1112 = vadd.f32 %v1050, %v1111
        %v1113 = vpop.f32.mrb[0].mxu0
        %v1114 = vpop.f32.mrb[0].mxu0
        %v1115 = vadd.f32 %v1050, %v1114
        %v1116 = vpop.f32.mrb[0].mxu0
        %1117 = vdwg.mxu0
        %v1118 = vmax.f32 %v1104, 0.0
        %v1119 = vmax.f32 %v1107, 0.0
        %v1120 = vmax.f32 %v1112, 0.0
        %v1121 = vmax.f32 %v1115, 0.0
        %v1122 = vpack.c.bf16 %v1119, %v1118
        %v1123 = vpack.c.bf16 %v1121, %v1120
        %v1124 = vld [vmem:[#allocation2 + $0xb0] sm:$0xf]
        %v1125 = vld [vmem:[#allocation2 + $0xb4] sm:$0xf]
        %v1126 = vld [vmem:[#allocation2 + $0xb8] sm:$0xf]
        %v1127 = vld [vmem:[#allocation2 + $0xbc] sm:$0xf]
        %v1128 = vld [vmem:[#allocation2 + $0xc0] sm:$0xf]
        %v1129 = vld [vmem:[#allocation2 + $0xc4] sm:$0xf]
        %v1130 = vld [vmem:[#allocation2 + $0xc8] sm:$0xf]
        %v1131 = vld [vmem:[#allocation2 + $0xcc] sm:$0xf]
        %v1132 = vld [vmem:[#allocation2 + $0xd0] sm:$0xf]
        %v1133 = vld [vmem:[#allocation2 + $0xd4] sm:$0xf]
        %v1134 = vld [vmem:[#allocation2 + $0xd8] sm:$0xf]
        %v1135 = vld [vmem:[#allocation2 + $0xdc] sm:$0xf]
        %v1136 = vld [vmem:[#allocation2 + $0xe0] sm:$0xf]
        %v1137 = vld [vmem:[#allocation2 + $0xe4] sm:$0xf]
        %v1138 = vld [vmem:[#allocation2 + $0xe8] sm:$0xf]
        %v1139 = vld [vmem:[#allocation2 + $0xec] sm:$0xf]
        %v1140 = vld [vmem:[%s2 + $0x5] sm:$0x1]
        %v1141 = vlaneseq
        %v1142 = vshrl.u32 %v1141, 7
        %v1143 = vsub.s32 0, %v1142
        %v1144 = vrot.slane %v1140, %v1143
        %v1161 = vunpack.c.l.b16 %v1124
        %v1162 = vunpack.c.l.b16 %v1125
        %v1163 = vunpack.c.l.b16 %v1126
        %v1164 = vunpack.c.l.b16 %v1127
        %v1165 = vunpack.c.l.b16 %v1128
        %v1166 = vunpack.c.l.b16 %v1129
        %v1167 = vunpack.c.l.b16 %v1130
        %v1168 = vunpack.c.l.b16 %v1131
        %v1169 = vunpack.c.l.b16 %v1132
        %v1170 = vunpack.c.l.b16 %v1133
        %v1171 = vunpack.c.l.b16 %v1134
        %v1172 = vunpack.c.l.b16 %v1135
        %v1173 = vunpack.c.l.b16 %v1136
        %v1174 = vunpack.c.l.b16 %v1137
        %v1175 = vunpack.c.l.b16 %v1138
        %v1176 = vunpack.c.l.b16 %v1139
        %v1177 = vpack.c.b16 %v1162, %v1161
        %v1178 = vpack.c.b16 %v1164, %v1163
        %v1179 = vpack.c.b16 %v1166, %v1165
        %v1180 = vpack.c.b16 %v1168, %v1167
        %v1181 = vpack.c.b16 %v1170, %v1169
        %v1182 = vpack.c.b16 %v1172, %v1171
        %v1183 = vpack.c.b16 %v1174, %v1173
        %v1184 = vpack.c.b16 %v1176, %v1175
        %1193 = vmatprep.subr.bf16.mxu0 0
        %1194 = vmatpush1.bf16.msra.mxu0 %v1177
        %1195 = vmatprep.subr.bf16.mxu0 0
        %1196 = vmatpush1.bf16.msra.mxu0 %v1178
        %1197 = vmatprep.subr.bf16.mxu0 0
        %1198 = vmatpush1.bf16.msra.mxu0 %v1179
        %1199 = vmatprep.subr.bf16.mxu0 0
        %1200 = vmatpush1.bf16.msra.mxu0 %v1180
        %1201 = vmatprep.subr.bf16.mxu0 0
        %1202 = vmatpush1.bf16.msra.mxu0 %v1181
        %1203 = vmatprep.subr.bf16.mxu0 0
        %1204 = vmatpush1.bf16.msra.mxu0 %v1182
        %1205 = vmatprep.subr.bf16.mxu0 0
        %1206 = vmatpush1.bf16.msra.mxu0 %v1183
        %1207 = vmatprep.subr.bf16.mxu0 0
        %1208 = vmatpush1.bf16.msra.mxu0 %v1184
        %1209 = vmatprep.subr.bf16.mxu0 0
        %1210 = vmatpush1.bf16.msra.mxu0 0
        %1211 = vmatprep.subr.bf16.mxu0 0
        %1212 = vmatpush1.bf16.msra.mxu0 0
        %1213 = vmatprep.subr.bf16.mxu0 0
        %1214 = vmatpush1.bf16.msra.mxu0 0
        %1215 = vmatprep.subr.bf16.mxu0 0
        %1216 = vmatpush1.bf16.msra.mxu0 0
        %1217 = vmatprep.subr.bf16.mxu0 0
        %1218 = vmatpush1.bf16.msra.mxu0 0
        %1219 = vmatprep.subr.bf16.mxu0 0
        %1220 = vmatpush1.bf16.msra.mxu0 0
        %1221 = vmatprep.subr.bf16.mxu0 0
        %1222 = vmatpush1.bf16.msra.mxu0 0
        %1223 = vmatprep.subr.bf16.mxu0 0
        %1224 = vmatpush1.bf16.msra.mxu0 0
        %1225 = vmatprep.mubr.bf16.mxu0 0
        %1226 = vmatmul.mubr.bf16.gmra.mrb[0].mxu0 %v1122
        %v1227 = vpop.f32.mrb[0].mxu0
        %v1228 = vadd.f32 %v1144, %v1227
        %v1229 = vpop.f32.mrb[0].mxu0
        %v1230 = vpop.f32.mrb[0].mxu0
        %v1231 = vadd.f32 %v1144, %v1230
        %v1232 = vpop.f32.mrb[0].mxu0
        %1233 = vmatprep.mubr.bf16.mxu0 0
        %1234 = vmatmul.mubr.bf16.gmra.mrb[0].mxu0 %v1123
        %v1235 = vpop.f32.mrb[0].mxu0
        %v1236 = vadd.f32 %v1144, %v1235
        %v1237 = vpop.f32.mrb[0].mxu0
        %v1238 = vpop.f32.mrb[0].mxu0
        %v1239 = vadd.f32 %v1144, %v1238
        %v1240 = vpop.f32.mrb[0].mxu0
        %1241 = vdwg.mxu0
        %v1242 = vpack.c.bf16 %v1231, %v1228
        %v1243 = vpack.c.bf16 %v1239, %v1236
        %v1246 = vunpack.c.l.b16 %v1242
        %v1247 = vunpack.c.h.b16 %v1242
        %v1248 = vunpack.c.l.b16 %v1243
        %v1249 = vunpack.c.h.b16 %v1243
        %v1250 = vpack.c.b16 %v1246, %v1246
        %v1251 = vpack.c.b16 %v1247, %v1247
        %v1252 = vpack.c.b16 %v1248, %v1248
        %v1253 = vpack.c.b16 %v1249, %v1249
        %1258 = vst [vmem:[%s187] sm:$0xf] %v1250
        %1259 = vst [vmem:[%s187 + $0x4] sm:$0xf] %v1251
        %1260 = vst [vmem:[%s187 + $0x8] sm:$0xf] %v1252
        %1261 = vst [vmem:[%s187 + $0xc] sm:$0xf] %v1253
        %s1262 = smul.u32 4, %s15
        %p1263 = scmp.lt.s32.totalorder %s1262, 7
        %s1264 = scalar_select %p1263, %s1262, 7
        %s1265 = smul.addr %s1264, 4
        %s1266 = scalar_lea.vmem %s3, %s1265
        // Predicated region
        $region37: #{flow_resize_y_label_class.1} parent=31 // pred_check
          %p1267 = pneg %p101
        $region38: #{flow_resize_y_label_class.1} parent=31 // pred_check_branch
          %1269 = sbr.rel (%p1267) target = $region40
        $region39: #{flow_resize_y_label_class.1} parent=31 // pred_region
          %s1270 = smul.u32 4, %s15
        $region40: #{flow_resize_y_label_class.1} parent=31 // pred_fallthru
          _
      $region32: #{flow_resize_y_label_class.1} parent=5 // pred_fallthru
        _
      %p1271 = scmp.le.s32.totalorder 2, %s10
      // Predicated region
      $region41: #{flow_resize_y_label_class.1} parent=5 // pred_check
        %p1272 = pneg %p1271
      $region42: #{flow_resize_y_label_class.1} parent=5 // pred_check_branch
        %1274 = sbr.rel (%p1272) target = $region44
      $region43: #{flow_resize_y_label_class.1} parent=5 // pred_region
        %s1275 = ssub.s32 %s10, 2
        // Predicated region
        $region45: #{flow_resize_y_label_class.1} parent=43 // pred_check
          %p1276 = pneg %p107
        $region46: #{flow_resize_y_label_class.1} parent=43 // pred_check_branch
          %1278 = sbr.rel (%p1276) target = $region48
        $region47: #{flow_resize_y_label_class.1} parent=43 // pred_region
          %s1279 = smul.u32 4, %s16
          %p1280 = scmp.lt.s32.totalorder %s1279, 7
          %s1281 = scalar_select %p1280, %s1279, 7
          %s1282 = smul.addr %s1281, 4
          %s1283 = scalar_lea.vmem %s3, %s1282
        $region48: #{flow_resize_y_label_class.1} parent=43 // pred_fallthru
          _
      $region44: #{flow_resize_y_label_class.1} parent=5 // pred_fallthru
        _
    $region6: #{flow_resize_y_label_class.1} parent=1 // loop_footer
      %s14 = sadd.s32 1, %s10
    $region7: #{flow_resize_y_label_class.1} parent=1 // loop_footer_branch
      %9 = sbr.rel target = $region3
    $region8: #{flow_resize_y_label_class.1} parent=1 // loop_exit
      _
    %1284 = vsyncpa [#allocation3], 1
    %s1285 = scalar_lea.sflag [#allocation3], 1
    %1286 = vsyncpa %s1285, 1

</llo_original>
